<compile_context>
chip_gen: v7x
topology: tpu7x:2x2x1
jax: 0.10.0
libtpu: 0.0.40
codegen_flags: <defaults>
</compile_context>

<pallas_src>
import functools

import jax
import jax.numpy as jnp
from jax.experimental import pallas as pl
from jax.experimental.pallas import tpu as pltpu


# ---------------------------------------------------------------------------
# Kernels
# ---------------------------------------------------------------------------
def _global_avg_kernel(x_ref, o_ref, *, inv):
    # x_ref: (rt, H*W), o_ref: (rt, 1).  Single lane-axis reduction per row.
    x = x_ref[...].astype(jnp.float32)
    o_ref[...] = (jnp.sum(x, axis=1, keepdims=True) * inv).astype(o_ref.dtype)


def _avgpool_kernel(x_ref, o_ref, *, kh, kw):
    # x_ref: (rt, H, W) NCHW rows (row = one (n, c) plane), o_ref: (rt, Ho, Wo).
    _, h, w = x_ref.shape
    ho = h - kh + 1
    wo = w - kw + 1
    inv = 1.0 / (kh * kw)

    # Separable pooling: kw shifted adds along W, then kh shifted adds along H
    # (kh + kw adds instead of kh * kw).  Slices are cast to f32 as they are
    # accumulated, so no full-tile f32 copy is materialized.
    row = x_ref[:, :, 0:wo].astype(jnp.float32)
    for dj in range(1, kw):
        row = row + x_ref[:, :, dj:dj + wo].astype(jnp.float32)

    acc = row[:, 0:ho, :]
    for di in range(1, kh):
        acc = acc + row[:, di:di + ho, :]

    o_ref[...] = (acc * inv).astype(o_ref.dtype)


# ---------------------------------------------------------------------------
# Tiling helpers
# ---------------------------------------------------------------------------
def _vmem_capacity_bytes():
    """Physical VMEM per TensorCore; conservative fallback = v7x's 64 MiB."""
    try:
        return int(pltpu.get_tpu_info().vmem_capacity_bytes)
    except Exception:
        return 64 << 20


def _divisors(n):
    out = set()
    i = 1
    while i * i <= n:
        if n % i == 0:
            out.add(i)
            out.add(n // i)
        i += 1
    return sorted(out)


def _pick_rows_tile(rows, hbm_per_row, vmem_per_row, vmem_budget, mult8=False):
    """Pick a divisor of `rows` as the per-step row tile.

    Targets ~2-8 MB of HBM traffic per grid step (per-step overhead ~0.35 us),
    keeps the double-buffered in/out tiles plus f32 intermediates under the VMEM
    budget, and prefers >= 2 grid steps (v7x has 2 TensorCores) once each step
    still carries >= ~1 MB.  `mult8`: the row dim sits second-to-last in the
    block, so it must be a multiple of 8 or span the full dim.
    """
    lo, hi = 1 << 20, 8 << 20
    divs = _divisors(rows)

    def layout_ok(d):
        return (not mult8) or d % 8 == 0 or d == rows

    cands = [d for d in divs if layout_ok(d) and d * vmem_per_row <= vmem_budget]
    if not cands:
        # Nothing fits the VMEM budget (extreme H*W per plane).
        # TODO(synk): tile H with a (kh-1)-row halo for single planes larger than VMEM.
        ok = [d for d in divs if layout_ok(d)]
        return min(ok) if ok else 1

    under = [d for d in cands if d * hbm_per_row <= hi]
    best = max(under) if under else min(cands)

    # Keep >= 2 grid steps for megacore / v7x if half-size tiles still move >= ~1 MB.
    if best == rows and rows > 1:
        split = [d for d in cands if d <= rows // 2 and d * hbm_per_row >= lo]
        if split:
            best = max(split)
    return best


def _compiler_params(need_bytes, vmem_cap):
    budget = vmem_cap - (8 << 20)                      # headroom for compiler scratch
    vmem_limit = int(min(budget, max(32 << 20, 2 * need_bytes)))
    return pltpu.CompilerParams(
        dimension_semantics=("parallel",),
        vmem_limit_bytes=vmem_limit,
    )


def _maybe_buffered_spec(block_shape, index_map, step_in_bytes, num_steps):
    # Triple-buffer the input when many tiny steps would be DMA-issue-latency bound.
    if step_in_bytes < (1 << 20) and num_steps > 2:
        return pl.BlockSpec(block_shape, index_map, pipeline_mode=pl.Buffered(3))
    return pl.BlockSpec(block_shape, index_map)


# ---------------------------------------------------------------------------
# Public entry point (== SimpleSpatialModule.forward)
# ---------------------------------------------------------------------------
def simple_spatial_module(x, spatial_type="avg", spatial_size=7):
    """Pallas implementation of SimpleSpatialModule.forward (avg pool, stride=1, pad=0)."""
    assert spatial_type == "avg"
    if isinstance(spatial_size, int):
        spatial_size = (spatial_size, spatial_size)
    kh, kw = spatial_size

    n, c, h, w = x.shape
    ho, wo = h - kh + 1, w - kw + 1
    assert ho >= 1 and wo >= 1, "kernel larger than input (padding=0)"

    rows = n * c
    itemsize = x.dtype.itemsize
    vmem_cap = _vmem_capacity_bytes()
    vmem_budget = vmem_cap - (8 << 20)
    inv = 1.0 / (kh * kw)
    f32_extra = 4 if itemsize < 4 else 0               # f32 working set only if upcasting

    if ho == 1 and wo == 1:
        # ---------------- Global-pool fast path (e.g. 7x7 pool on a 7x7 map) ----------
        hw = h * w
        x2 = x.reshape(rows, hw)                       # free contiguous collapse of NCHW
        hbm_per_row = (hw + 1) * itemsize
        vmem_per_row = 2 * (hw + 1) * itemsize + hw * f32_extra
        rt = _pick_rows_tile(rows, hbm_per_row, vmem_per_row, vmem_budget, mult8=True)
        num_steps = rows // rt
        step_in_bytes = rt * hw * itemsize

        out2 = pl.pallas_call(
            functools.partial(_global_avg_kernel, inv=inv),
            out_shape=jax.ShapeDtypeStruct((rows, 1), x.dtype),
            grid_spec=pltpu.PrefetchScalarGridSpec(
                num_scalar_prefetch=0,
                grid=(num_steps,),
                in_specs=[_maybe_buffered_spec((rt, hw), lambda i: (i, 0),
                                               step_in_bytes, num_steps)],
                out_specs=pl.BlockSpec((rt, 1), lambda i: (i, 0)),
            ),
            compiler_params=_compiler_params(rt * vmem_per_row + (2 << 20), vmem_cap),
            cost_estimate=pl.CostEstimate(
                flops=int(rows * hw),
                transcendentals=0,
                bytes_accessed=int(rows * hbm_per_row),
            ),
        )(x2)
        return out2.reshape(n, c, 1, 1)

    # -------------------- General stride-1 pooling path --------------------------------
    x3 = x.reshape(rows, h, w)                         # free contiguous collapse of NCHW
    hbm_per_row = (h * w + ho * wo) * itemsize
    # double-buffered in+out tiles + f32 separable intermediates (row sums + accumulator)
    vmem_per_row = 2 * (h * w + ho * wo) * itemsize + (h * wo + ho * wo) * 4
    rt = _pick_rows_tile(rows, hbm_per_row, vmem_per_row, vmem_budget, mult8=False)
    num_steps = rows // rt
    step_in_bytes = rt * h * w * itemsize
    flops = int(rows * (h * wo * kw + ho * wo * (kh + 1)))

    out3 = pl.pallas_call(
        functools.partial(_avgpool_kernel, kh=kh, kw=kw),
        out_shape=jax.ShapeDtypeStruct((rows, ho, wo), x.dtype),
        grid_spec=pltpu.PrefetchScalarGridSpec(
            num_scalar_prefetch=0,
            grid=(num_steps,),
            in_specs=[_maybe_buffered_spec((rt, h, w), lambda i: (i, 0, 0),
                                           step_in_bytes, num_steps)],
            out_specs=pl.BlockSpec((rt, ho, wo), lambda i: (i, 0, 0)),
        ),
        compiler_params=_compiler_params(rt * vmem_per_row + (2 << 20), vmem_cap),
        cost_estimate=pl.CostEstimate(
            flops=flops,
            transcendentals=0,
            bytes_accessed=int(rows * hbm_per_row),
        ),
    )(x3)
    return out3.reshape(n, c, ho, wo)


if __name__ == "__main__":
    key = jax.random.PRNGKey(0)

    # Small shapes consistent with the module: N=2, C=4, H=W=16, spatial_size=7
    x = jax.random.normal(key, (2, 4, 16, 16), dtype=jnp.float32)
    out = jax.block_until_ready(simple_spatial_module(x, spatial_type="avg", spatial_size=7))

    # Pure-JAX reference (same semantics as nn.AvgPool2d(7, stride=1, padding=0))
    kh = kw = 7
    ho, wo = x.shape[2] - kh + 1, x.shape[3] - kw + 1
    ref = jnp.zeros((x.shape[0], x.shape[1], ho, wo), jnp.float32)
    for di in range(kh):
        for dj in range(kw):
            ref = ref + x[:, :, di:di + ho, dj:dj + wo]
    ref = ref / (kh * kw)

    assert out.shape == (2, 4, 10, 10), out.shape
    assert jnp.allclose(out, ref, atol=1e-5, rtol=1e-5)

    # Global-pool fast path (7x7 pool on 7x7 map -> 1x1).
    xg = jax.random.normal(jax.random.PRNGKey(1), (2, 4, 7, 7), dtype=jnp.float32)
    outg = jax.block_until_ready(simple_spatial_module(xg, spatial_size=7))
    refg = jnp.mean(xg, axis=(2, 3), keepdims=True)
    assert outg.shape == (2, 4, 1, 1), outg.shape
    assert jnp.allclose(outg, refg, atol=1e-5, rtol=1e-5)

    print("KERNEL_OK")
</pallas_src>

<mosaic_0001>
module attributes {stable_mosaic.version = 11 : i64} {
  func.func @_avgpool_kernel(%arg0: i32, %arg1: memref<8x16x16xf32, #tpu.memory_space<vmem>>, %arg2: memref<8x10x10xf32, #tpu.memory_space<vmem>>) attributes {dimension_semantics = [#tpu.dimension_semantics<parallel>], iteration_bounds = array<i64: 1>, scalar_prefetch = 0 : i64, scratch_operands = 0 : i64, tpu.core_type = #tpu.core_type<tc>, window_params = [{transform_indices = @transform_0, window_bounds = array<i64: 8, 16, 16>}, {transform_indices = @transform_1, window_bounds = array<i64: 8, 10, 10>}]} {
    %c0 = arith.constant 0 : index
    %c0_0 = arith.constant 0 : index
    %c0_1 = arith.constant 0 : index
    %0 = vector.load %arg1[%c0, %c0_0, %c0_1] : memref<8x16x16xf32, #tpu.memory_space<vmem>>, vector<8x16x10xf32>
    %c0_2 = arith.constant 0 : index
    %c0_3 = arith.constant 0 : index
    %c1 = arith.constant 1 : index
    %1 = vector.load %arg1[%c0_2, %c0_3, %c1] : memref<8x16x16xf32, #tpu.memory_space<vmem>>, vector<8x16x10xf32>
    %2 = arith.addf %0, %1 : vector<8x16x10xf32>
    %c0_4 = arith.constant 0 : index
    %c0_5 = arith.constant 0 : index
    %c2 = arith.constant 2 : index
    %3 = vector.load %arg1[%c0_4, %c0_5, %c2] : memref<8x16x16xf32, #tpu.memory_space<vmem>>, vector<8x16x10xf32>
    %4 = arith.addf %2, %3 : vector<8x16x10xf32>
    %c0_6 = arith.constant 0 : index
    %c0_7 = arith.constant 0 : index
    %c3 = arith.constant 3 : index
    %5 = vector.load %arg1[%c0_6, %c0_7, %c3] : memref<8x16x16xf32, #tpu.memory_space<vmem>>, vector<8x16x10xf32>
    %6 = arith.addf %4, %5 : vector<8x16x10xf32>
    %c0_8 = arith.constant 0 : index
    %c0_9 = arith.constant 0 : index
    %c4 = arith.constant 4 : index
    %7 = vector.load %arg1[%c0_8, %c0_9, %c4] : memref<8x16x16xf32, #tpu.memory_space<vmem>>, vector<8x16x10xf32>
    %8 = arith.addf %6, %7 : vector<8x16x10xf32>
    %c0_10 = arith.constant 0 : index
    %c0_11 = arith.constant 0 : index
    %c5 = arith.constant 5 : index
    %9 = vector.load %arg1[%c0_10, %c0_11, %c5] : memref<8x16x16xf32, #tpu.memory_space<vmem>>, vector<8x16x10xf32>
    %10 = arith.addf %8, %9 : vector<8x16x10xf32>
    %c0_12 = arith.constant 0 : index
    %c0_13 = arith.constant 0 : index
    %c6 = arith.constant 6 : index
    %11 = vector.load %arg1[%c0_12, %c0_13, %c6] : memref<8x16x16xf32, #tpu.memory_space<vmem>>, vector<8x16x10xf32>
    %12 = arith.addf %10, %11 : vector<8x16x10xf32>
    %13 = vector.extract_strided_slice %12 {offsets = [0, 0, 0], sizes = [8, 10, 10], strides = [1, 1, 1]} : vector<8x16x10xf32> to vector<8x10x10xf32>
    %14 = vector.extract_strided_slice %12 {offsets = [0, 1, 0], sizes = [8, 10, 10], strides = [1, 1, 1]} : vector<8x16x10xf32> to vector<8x10x10xf32>
    %15 = arith.addf %13, %14 : vector<8x10x10xf32>
    %16 = vector.extract_strided_slice %12 {offsets = [0, 2, 0], sizes = [8, 10, 10], strides = [1, 1, 1]} : vector<8x16x10xf32> to vector<8x10x10xf32>
    %17 = arith.addf %15, %16 : vector<8x10x10xf32>
    %18 = vector.extract_strided_slice %12 {offsets = [0, 3, 0], sizes = [8, 10, 10], strides = [1, 1, 1]} : vector<8x16x10xf32> to vector<8x10x10xf32>
    %19 = arith.addf %17, %18 : vector<8x10x10xf32>
    %20 = vector.extract_strided_slice %12 {offsets = [0, 4, 0], sizes = [8, 10, 10], strides = [1, 1, 1]} : vector<8x16x10xf32> to vector<8x10x10xf32>
    %21 = arith.addf %19, %20 : vector<8x10x10xf32>
    %22 = vector.extract_strided_slice %12 {offsets = [0, 5, 0], sizes = [8, 10, 10], strides = [1, 1, 1]} : vector<8x16x10xf32> to vector<8x10x10xf32>
    %23 = arith.addf %21, %22 : vector<8x10x10xf32>
    %24 = vector.extract_strided_slice %12 {offsets = [0, 6, 0], sizes = [8, 10, 10], strides = [1, 1, 1]} : vector<8x16x10xf32> to vector<8x10x10xf32>
    %25 = arith.addf %23, %24 : vector<8x10x10xf32>
    %cst = arith.constant 0.0204081628 : f32
    %26 = vector.broadcast %cst : f32 to vector<8x10x10xf32>
    %27 = arith.mulf %25, %26 : vector<8x10x10xf32>
    %c0_14 = arith.constant 0 : index
    %c0_15 = arith.constant 0 : index
    %c0_16 = arith.constant 0 : index
    %28 = vector.load %arg2[%c0_14, %c0_15, %c0_16] : memref<8x10x10xf32, #tpu.memory_space<vmem>>, vector<8x10x10xf32>
    tpu.vector_store %arg2[%c0_14, %c0_15, %c0_16], %27 {strides = array<i32>} : memref<8x10x10xf32, #tpu.memory_space<vmem>>, vector<8x10x10xf32>,
    return
  }
  func.func @transform_0(%arg0: i32) -> (i32, i32, i32) {
    %c0_i32 = arith.constant 0 : i32
    %c0_i32_0 = arith.constant 0 : i32
    %c0_i32_1 = arith.constant 0 : i32
    return %arg0, %c0_i32, %c0_i32_0 : i32, i32, i32
  }
  func.func @transform_1(%arg0: i32) -> (i32, i32, i32) {
    %c0_i32 = arith.constant 0 : i32
    %c0_i32_0 = arith.constant 0 : i32
    %c0_i32_1 = arith.constant 0 : i32
    return %arg0, %c0_i32, %c0_i32_0 : i32, i32, i32
  }
}

</mosaic_0001>

<llo_original>
// kernel: tpu_custom_call.1
$region0: #{tpu_custom_call.1}
  #allocation0 [shape = 'u32[]', space=smem, size = 0x4, offset = 0x4, fixed_abs, tag = 'smem constant byte address 0x4 - core index']
  #allocation1 [shape = 'u32[144,128]{1,0:T(1,128)}', space=vmem, size = 0x12000, scoped, tag = 'internal scratch']
  %s0 = inlined_call_operand.hbm [shape: f32[8,16,16], index: 0, kind: input, shape index: {}]
  %s1 = inlined_call_operand.vmem [shape: f32[8,10,10], index: 1, kind: output, shape index: {}]
  %s2 = sld [smem:[#allocation0]]
  $region18: #{tpu_custom_call.1} parent=0
    _
  %s4 = ssub.s32 1, %s2
  %s5 = scalar_select 0, %s4, %s2
  $region1: #{tpu_custom_call.1} parent=0
    #allocation2 [shape = 'u8[65536]{0}', space=vmem, size = 0x10000, scoped, tag = 'input window, operand 0, single buffered']
    #allocation3 [shape = 's32[1]{0}', space=sflag, size = 0x4, scoped, tag = 'scoped memory for tpu_custom_call.1']
    %6 = vsyncpa [#allocation3], 0
    // Predicated region
    $region2: #{tpu_custom_call.1} parent=1 // pred_check
      _
    $region3: #{tpu_custom_call.1} parent=1 // pred_check_branch
      %8 = sbr.rel (0) target = $region5
    $region4: #{tpu_custom_call.1} parent=1 // pred_region
      %s10 = ssub.s32 2048, 2048
      %11 = vsyncadd [#allocation3], %s10
      %s12 = sshll.u32 [#allocation2], 4
      %s13 = int_to_ptr.vmem [resolvable:$true] %s12
      %18 = dma.hbm_to_vmem [thread:$0]  %s0, 2048, %s13, [#allocation3], 128, 128, 8
    $region5: #{tpu_custom_call.1} parent=1 // pred_fallthru
      _
    // Predicated region
    $region6: #{tpu_custom_call.1} parent=1 // pred_check
      _
    $region7: #{tpu_custom_call.1} parent=1 // pred_check_branch
      %20 = sbr.rel (0) target = $region9
    $region8: #{tpu_custom_call.1} parent=1 // pred_region
      %21 = dma.done [#allocation3], 2048
    $region9: #{tpu_custom_call.1} parent=1 // pred_fallthru
      _
    %v22 = vld [vmem:[#allocation2] sm:$0xff]
    %v23 = vld [vmem:[#allocation2 + $0x8] sm:$0xff]
    %v24 = vld [vmem:[#allocation2 + $0x10] sm:$0xff]
    %v25 = vld [vmem:[#allocation2 + $0x18] sm:$0xff]
    %v26 = vld [vmem:[#allocation2 + $0x20] sm:$0xff]
    %v27 = vld [vmem:[#allocation2 + $0x28] sm:$0xff]
    %v28 = vld [vmem:[#allocation2 + $0x30] sm:$0xff]
    %v29 = vld [vmem:[#allocation2 + $0x38] sm:$0xff]
    %v30 = vld [vmem:[#allocation2 + $0x40] sm:$0xff]
    %v31 = vld [vmem:[#allocation2 + $0x48] sm:$0xff]
    %v32 = vld [vmem:[#allocation2 + $0x50] sm:$0xff]
    %v33 = vld [vmem:[#allocation2 + $0x58] sm:$0xff]
    %v34 = vld [vmem:[#allocation2 + $0x60] sm:$0xff]
    %v35 = vld [vmem:[#allocation2 + $0x68] sm:$0xff]
    %v36 = vld [vmem:[#allocation2 + $0x70] sm:$0xff]
    %v37 = vld [vmem:[#allocation2 + $0x78] sm:$0xff]
    %54 = vrot.lane.b32.xlu0 %v22, 127
    %v55 = vpop.permute.xlu0 %54
    %56 = vrot.lane.b32.xlu0 %v23, 127
    %v57 = vpop.permute.xlu0 %56
    %58 = vrot.lane.b32.xlu0 %v24, 127
    %v59 = vpop.permute.xlu0 %58
    %60 = vrot.lane.b32.xlu0 %v25, 127
    %v61 = vpop.permute.xlu0 %60
    %62 = vrot.lane.b32.xlu0 %v26, 127
    %v63 = vpop.permute.xlu0 %62
    %64 = vrot.lane.b32.xlu0 %v27, 127
    %v65 = vpop.permute.xlu0 %64
    %66 = vrot.lane.b32.xlu0 %v28, 127
    %v67 = vpop.permute.xlu0 %66
    %68 = vrot.lane.b32.xlu0 %v29, 127
    %v69 = vpop.permute.xlu0 %68
    %70 = vrot.lane.b32.xlu0 %v30, 127
    %v71 = vpop.permute.xlu0 %70
    %72 = vrot.lane.b32.xlu0 %v31, 127
    %v73 = vpop.permute.xlu0 %72
    %74 = vrot.lane.b32.xlu0 %v32, 127
    %v75 = vpop.permute.xlu0 %74
    %76 = vrot.lane.b32.xlu0 %v33, 127
    %v77 = vpop.permute.xlu0 %76
    %78 = vrot.lane.b32.xlu0 %v34, 127
    %v79 = vpop.permute.xlu0 %78
    %80 = vrot.lane.b32.xlu0 %v35, 127
    %v81 = vpop.permute.xlu0 %80
    %82 = vrot.lane.b32.xlu0 %v36, 127
    %v83 = vpop.permute.xlu0 %82
    %84 = vrot.lane.b32.xlu0 %v37, 127
    %v85 = vpop.permute.xlu0 %84
    %v102 = vadd.f32 %v22, %v55
    %v103 = vadd.f32 %v23, %v57
    %v104 = vadd.f32 %v24, %v59
    %v105 = vadd.f32 %v25, %v61
    %v106 = vadd.f32 %v26, %v63
    %v107 = vadd.f32 %v27, %v65
    %v108 = vadd.f32 %v28, %v67
    %v109 = vadd.f32 %v29, %v69
    %v110 = vadd.f32 %v30, %v71
    %v111 = vadd.f32 %v31, %v73
    %v112 = vadd.f32 %v32, %v75
    %v113 = vadd.f32 %v33, %v77
    %v114 = vadd.f32 %v34, %v79
    %v115 = vadd.f32 %v35, %v81
    %v116 = vadd.f32 %v36, %v83
    %v117 = vadd.f32 %v37, %v85
    %118 = vrot.lane.b32.xlu0 %v22, 126
    %v119 = vpop.permute.xlu0 %118
    %120 = vrot.lane.b32.xlu0 %v23, 126
    %v121 = vpop.permute.xlu0 %120
    %122 = vrot.lane.b32.xlu0 %v24, 126
    %v123 = vpop.permute.xlu0 %122
    %124 = vrot.lane.b32.xlu0 %v25, 126
    %v125 = vpop.permute.xlu0 %124
    %126 = vrot.lane.b32.xlu0 %v26, 126
    %v127 = vpop.permute.xlu0 %126
    %128 = vrot.lane.b32.xlu0 %v27, 126
    %v129 = vpop.permute.xlu0 %128
    %130 = vrot.lane.b32.xlu0 %v28, 126
    %v131 = vpop.permute.xlu0 %130
    %132 = vrot.lane.b32.xlu0 %v29, 126
    %v133 = vpop.permute.xlu0 %132
    %134 = vrot.lane.b32.xlu0 %v30, 126
    %v135 = vpop.permute.xlu0 %134
    %136 = vrot.lane.b32.xlu0 %v31, 126
    %v137 = vpop.permute.xlu0 %136
    %138 = vrot.lane.b32.xlu0 %v32, 126
    %v139 = vpop.permute.xlu0 %138
    %140 = vrot.lane.b32.xlu0 %v33, 126
    %v141 = vpop.permute.xlu0 %140
    %142 = vrot.lane.b32.xlu0 %v34, 126
    %v143 = vpop.permute.xlu0 %142
    %144 = vrot.lane.b32.xlu0 %v35, 126
    %v145 = vpop.permute.xlu0 %144
    %146 = vrot.lane.b32.xlu0 %v36, 126
    %v147 = vpop.permute.xlu0 %146
    %148 = vrot.lane.b32.xlu0 %v37, 126
    %v149 = vpop.permute.xlu0 %148
    %v166 = vadd.f32 %v102, %v119
    %v167 = vadd.f32 %v103, %v121
    %v168 = vadd.f32 %v104, %v123
    %v169 = vadd.f32 %v105, %v125
    %v170 = vadd.f32 %v106, %v127
    %v171 = vadd.f32 %v107, %v129
    %v172 = vadd.f32 %v108, %v131
    %v173 = vadd.f32 %v109, %v133
    %v174 = vadd.f32 %v110, %v135
    %v175 = vadd.f32 %v111, %v137
    %v176 = vadd.f32 %v112, %v139
    %v177 = vadd.f32 %v113, %v141
    %v178 = vadd.f32 %v114, %v143
    %v179 = vadd.f32 %v115, %v145
    %v180 = vadd.f32 %v116, %v147
    %v181 = vadd.f32 %v117, %v149
    %182 = vrot.lane.b32.xlu0 %v22, 125
    %v183 = vpop.permute.xlu0 %182
    %184 = vrot.lane.b32.xlu0 %v23, 125
    %v185 = vpop.permute.xlu0 %184
    %186 = vrot.lane.b32.xlu0 %v24, 125
    %v187 = vpop.permute.xlu0 %186
    %188 = vrot.lane.b32.xlu0 %v25, 125
    %v189 = vpop.permute.xlu0 %188
    %190 = vrot.lane.b32.xlu0 %v26, 125
    %v191 = vpop.permute.xlu0 %190
    %192 = vrot.lane.b32.xlu0 %v27, 125
    %v193 = vpop.permute.xlu0 %192
    %194 = vrot.lane.b32.xlu0 %v28, 125
    %v195 = vpop.permute.xlu0 %194
    %196 = vrot.lane.b32.xlu0 %v29, 125
    %v197 = vpop.permute.xlu0 %196
    %198 = vrot.lane.b32.xlu0 %v30, 125
    %v199 = vpop.permute.xlu0 %198
    %200 = vrot.lane.b32.xlu0 %v31, 125
    %v201 = vpop.permute.xlu0 %200
    %202 = vrot.lane.b32.xlu0 %v32, 125
    %v203 = vpop.permute.xlu0 %202
    %204 = vrot.lane.b32.xlu0 %v33, 125
    %v205 = vpop.permute.xlu0 %204
    %206 = vrot.lane.b32.xlu0 %v34, 125
    %v207 = vpop.permute.xlu0 %206
    %208 = vrot.lane.b32.xlu0 %v35, 125
    %v209 = vpop.permute.xlu0 %208
    %210 = vrot.lane.b32.xlu0 %v36, 125
    %v211 = vpop.permute.xlu0 %210
    %212 = vrot.lane.b32.xlu0 %v37, 125
    %v213 = vpop.permute.xlu0 %212
    %v230 = vadd.f32 %v166, %v183
    %v231 = vadd.f32 %v167, %v185
    %v232 = vadd.f32 %v168, %v187
    %v233 = vadd.f32 %v169, %v189
    %v234 = vadd.f32 %v170, %v191
    %v235 = vadd.f32 %v171, %v193
    %v236 = vadd.f32 %v172, %v195
    %v237 = vadd.f32 %v173, %v197
    %v238 = vadd.f32 %v174, %v199
    %v239 = vadd.f32 %v175, %v201
    %v240 = vadd.f32 %v176, %v203
    %v241 = vadd.f32 %v177, %v205
    %v242 = vadd.f32 %v178, %v207
    %v243 = vadd.f32 %v179, %v209
    %v244 = vadd.f32 %v180, %v211
    %v245 = vadd.f32 %v181, %v213
    %246 = vrot.lane.b32.xlu0 %v22, 124
    %v247 = vpop.permute.xlu0 %246
    %248 = vrot.lane.b32.xlu0 %v23, 124
    %v249 = vpop.permute.xlu0 %248
    %250 = vrot.lane.b32.xlu0 %v24, 124
    %v251 = vpop.permute.xlu0 %250
    %252 = vrot.lane.b32.xlu0 %v25, 124
    %v253 = vpop.permute.xlu0 %252
    %254 = vrot.lane.b32.xlu0 %v26, 124
    %v255 = vpop.permute.xlu0 %254
    %256 = vrot.lane.b32.xlu0 %v27, 124
    %v257 = vpop.permute.xlu0 %256
    %258 = vrot.lane.b32.xlu0 %v28, 124
    %v259 = vpop.permute.xlu0 %258
    %260 = vrot.lane.b32.xlu0 %v29, 124
    %v261 = vpop.permute.xlu0 %260
    %262 = vrot.lane.b32.xlu0 %v30, 124
    %v263 = vpop.permute.xlu0 %262
    %264 = vrot.lane.b32.xlu0 %v31, 124
    %v265 = vpop.permute.xlu0 %264
    %266 = vrot.lane.b32.xlu0 %v32, 124
    %v267 = vpop.permute.xlu0 %266
    %268 = vrot.lane.b32.xlu0 %v33, 124
    %v269 = vpop.permute.xlu0 %268
    %270 = vrot.lane.b32.xlu0 %v34, 124
    %v271 = vpop.permute.xlu0 %270
    %272 = vrot.lane.b32.xlu0 %v35, 124
    %v273 = vpop.permute.xlu0 %272
    %274 = vrot.lane.b32.xlu0 %v36, 124
    %v275 = vpop.permute.xlu0 %274
    %276 = vrot.lane.b32.xlu0 %v37, 124
    %v277 = vpop.permute.xlu0 %276
    %v294 = vadd.f32 %v230, %v247
    %v295 = vadd.f32 %v231, %v249
    %v296 = vadd.f32 %v232, %v251
    %v297 = vadd.f32 %v233, %v253
    %v298 = vadd.f32 %v234, %v255
    %v299 = vadd.f32 %v235, %v257
    %v300 = vadd.f32 %v236, %v259
    %v301 = vadd.f32 %v237, %v261
    %v302 = vadd.f32 %v238, %v263
    %v303 = vadd.f32 %v239, %v265
    %v304 = vadd.f32 %v240, %v267
    %v305 = vadd.f32 %v241, %v269
    %v306 = vadd.f32 %v242, %v271
    %v307 = vadd.f32 %v243, %v273
    %v308 = vadd.f32 %v244, %v275
    %v309 = vadd.f32 %v245, %v277
    %310 = vrot.lane.b32.xlu0 %v22, 123
    %v311 = vpop.permute.xlu0 %310
    %312 = vrot.lane.b32.xlu0 %v23, 123
    %v313 = vpop.permute.xlu0 %312
    %314 = vrot.lane.b32.xlu0 %v24, 123
    %v315 = vpop.permute.xlu0 %314
    %316 = vrot.lane.b32.xlu0 %v25, 123
    %v317 = vpop.permute.xlu0 %316
    %318 = vrot.lane.b32.xlu0 %v26, 123
    %v319 = vpop.permute.xlu0 %318
    %320 = vrot.lane.b32.xlu0 %v27, 123
    %v321 = vpop.permute.xlu0 %320
    %322 = vrot.lane.b32.xlu0 %v28, 123
    %v323 = vpop.permute.xlu0 %322
    %324 = vrot.lane.b32.xlu0 %v29, 123
    %v325 = vpop.permute.xlu0 %324
    %326 = vrot.lane.b32.xlu0 %v30, 123
    %v327 = vpop.permute.xlu0 %326
    %328 = vrot.lane.b32.xlu0 %v31, 123
    %v329 = vpop.permute.xlu0 %328
    %330 = vrot.lane.b32.xlu0 %v32, 123
    %v331 = vpop.permute.xlu0 %330
    %332 = vrot.lane.b32.xlu0 %v33, 123
    %v333 = vpop.permute.xlu0 %332
    %334 = vrot.lane.b32.xlu0 %v34, 123
    %v335 = vpop.permute.xlu0 %334
    %336 = vrot.lane.b32.xlu0 %v35, 123
    %v337 = vpop.permute.xlu0 %336
    %338 = vrot.lane.b32.xlu0 %v36, 123
    %v339 = vpop.permute.xlu0 %338
    %340 = vrot.lane.b32.xlu0 %v37, 123
    %v341 = vpop.permute.xlu0 %340
    %v358 = vadd.f32 %v294, %v311
    %v359 = vadd.f32 %v295, %v313
    %v360 = vadd.f32 %v296, %v315
    %v361 = vadd.f32 %v297, %v317
    %v362 = vadd.f32 %v298, %v319
    %v363 = vadd.f32 %v299, %v321
    %v364 = vadd.f32 %v300, %v323
    %v365 = vadd.f32 %v301, %v325
    %v366 = vadd.f32 %v302, %v327
    %v367 = vadd.f32 %v303, %v329
    %v368 = vadd.f32 %v304, %v331
    %v369 = vadd.f32 %v305, %v333
    %v370 = vadd.f32 %v306, %v335
    %v371 = vadd.f32 %v307, %v337
    %v372 = vadd.f32 %v308, %v339
    %v373 = vadd.f32 %v309, %v341
    %374 = vrot.lane.b32.xlu0 %v22, 122
    %v375 = vpop.permute.xlu0 %374
    %376 = vrot.lane.b32.xlu0 %v23, 122
    %v377 = vpop.permute.xlu0 %376
    %378 = vrot.lane.b32.xlu0 %v24, 122
    %v379 = vpop.permute.xlu0 %378
    %380 = vrot.lane.b32.xlu0 %v25, 122
    %v381 = vpop.permute.xlu0 %380
    %382 = vrot.lane.b32.xlu0 %v26, 122
    %v383 = vpop.permute.xlu0 %382
    %384 = vrot.lane.b32.xlu0 %v27, 122
    %v385 = vpop.permute.xlu0 %384
    %386 = vrot.lane.b32.xlu0 %v28, 122
    %v387 = vpop.permute.xlu0 %386
    %388 = vrot.lane.b32.xlu0 %v29, 122
    %v389 = vpop.permute.xlu0 %388
    %390 = vrot.lane.b32.xlu0 %v30, 122
    %v391 = vpop.permute.xlu0 %390
    %392 = vrot.lane.b32.xlu0 %v31, 122
    %v393 = vpop.permute.xlu0 %392
    %394 = vrot.lane.b32.xlu0 %v32, 122
    %v395 = vpop.permute.xlu0 %394
    %396 = vrot.lane.b32.xlu0 %v33, 122
    %v397 = vpop.permute.xlu0 %396
    %398 = vrot.lane.b32.xlu0 %v34, 122
    %v399 = vpop.permute.xlu0 %398
    %400 = vrot.lane.b32.xlu0 %v35, 122
    %v401 = vpop.permute.xlu0 %400
    %402 = vrot.lane.b32.xlu0 %v36, 122
    %v403 = vpop.permute.xlu0 %402
    %404 = vrot.lane.b32.xlu0 %v37, 122
    %v405 = vpop.permute.xlu0 %404
    %v422 = vadd.f32 %v358, %v375
    %v423 = vadd.f32 %v359, %v377
    %v424 = vadd.f32 %v360, %v379
    %v425 = vadd.f32 %v361, %v381
    %v426 = vadd.f32 %v362, %v383
    %v427 = vadd.f32 %v363, %v385
    %v428 = vadd.f32 %v364, %v387
    %v429 = vadd.f32 %v365, %v389
    %v430 = vadd.f32 %v366, %v391
    %v431 = vadd.f32 %v367, %v393
    %v432 = vadd.f32 %v368, %v395
    %v433 = vadd.f32 %v369, %v397
    %v434 = vadd.f32 %v370, %v399
    %v435 = vadd.f32 %v371, %v401
    %v436 = vadd.f32 %v372, %v403
    %v437 = vadd.f32 %v373, %v405
    %vm454 = vcmask 1046528
    %v455 = vrot.slane %v422, 1
    %v456 = vrot.slane %v423, 1
    %v457 = vsel %vm454, %v455, %v456
    %v458 = vrot.slane %v424, 1
    %v459 = vrot.slane %v425, 1
    %v460 = vsel %vm454, %v458, %v459
    %v461 = vrot.slane %v426, 1
    %v462 = vrot.slane %v427, 1
    %v463 = vsel %vm454, %v461, %v462
    %v464 = vrot.slane %v428, 1
    %v465 = vrot.slane %v429, 1
    %v466 = vsel %vm454, %v464, %v465
    %v467 = vrot.slane %v430, 1
    %v468 = vrot.slane %v431, 1
    %v469 = vsel %vm454, %v467, %v468
    %v470 = vrot.slane %v432, 1
    %v471 = vrot.slane %v433, 1
    %v472 = vsel %vm454, %v470, %v471
    %v473 = vrot.slane %v434, 1
    %v474 = vrot.slane %v435, 1
    %v475 = vsel %vm454, %v473, %v474
    %v476 = vrot.slane %v436, 1
    %v477 = vrot.slane %v437, 1
    %v478 = vsel %vm454, %v476, %v477
    %v495 = vadd.f32 %v422, %v457
    %v496 = vadd.f32 %v423, %v456
    %v497 = vadd.f32 %v424, %v460
    %v498 = vadd.f32 %v425, %v459
    %v499 = vadd.f32 %v426, %v463
    %v500 = vadd.f32 %v427, %v462
    %v501 = vadd.f32 %v428, %v466
    %v502 = vadd.f32 %v429, %v465
    %v503 = vadd.f32 %v430, %v469
    %v504 = vadd.f32 %v431, %v468
    %v505 = vadd.f32 %v432, %v472
    %v506 = vadd.f32 %v433, %v471
    %v507 = vadd.f32 %v434, %v475
    %v508 = vadd.f32 %v435, %v474
    %v509 = vadd.f32 %v436, %v478
    %v510 = vadd.f32 %v437, %v477
    %vm511 = vcmask 1045504
    %v512 = vrot.slane %v422, 2
    %v513 = vrot.slane %v423, 2
    %v514 = vsel %vm511, %v512, %v513
    %v515 = vrot.slane %v424, 2
    %v516 = vrot.slane %v425, 2
    %v517 = vsel %vm511, %v515, %v516
    %v518 = vrot.slane %v426, 2
    %v519 = vrot.slane %v427, 2
    %v520 = vsel %vm511, %v518, %v519
    %v521 = vrot.slane %v428, 2
    %v522 = vrot.slane %v429, 2
    %v523 = vsel %vm511, %v521, %v522
    %v524 = vrot.slane %v430, 2
    %v525 = vrot.slane %v431, 2
    %v526 = vsel %vm511, %v524, %v525
    %v527 = vrot.slane %v432, 2
    %v528 = vrot.slane %v433, 2
    %v529 = vsel %vm511, %v527, %v528
    %v530 = vrot.slane %v434, 2
    %v531 = vrot.slane %v435, 2
    %v532 = vsel %vm511, %v530, %v531
    %v533 = vrot.slane %v436, 2
    %v534 = vrot.slane %v437, 2
    %v535 = vsel %vm511, %v533, %v534
    %v552 = vadd.f32 %v495, %v514
    %v553 = vadd.f32 %v496, %v513
    %v554 = vadd.f32 %v497, %v517
    %v555 = vadd.f32 %v498, %v516
    %v556 = vadd.f32 %v499, %v520
    %v557 = vadd.f32 %v500, %v519
    %v558 = vadd.f32 %v501, %v523
    %v559 = vadd.f32 %v502, %v522
    %v560 = vadd.f32 %v503, %v526
    %v561 = vadd.f32 %v504, %v525
    %v562 = vadd.f32 %v505, %v529
    %v563 = vadd.f32 %v506, %v528
    %v564 = vadd.f32 %v507, %v532
    %v565 = vadd.f32 %v508, %v531
    %v566 = vadd.f32 %v509, %v535
    %v567 = vadd.f32 %v510, %v534
    %vm568 = vcmask 1044480
    %v569 = vrot.slane %v422, 3
    %v570 = vrot.slane %v423, 3
    %v571 = vsel %vm568, %v569, %v570
    %v572 = vrot.slane %v424, 3
    %v573 = vrot.slane %v425, 3
    %v574 = vsel %vm568, %v572, %v573
    %v575 = vrot.slane %v426, 3
    %v576 = vrot.slane %v427, 3
    %v577 = vsel %vm568, %v575, %v576
    %v578 = vrot.slane %v428, 3
    %v579 = vrot.slane %v429, 3
    %v580 = vsel %vm568, %v578, %v579
    %v581 = vrot.slane %v430, 3
    %v582 = vrot.slane %v431, 3
    %v583 = vsel %vm568, %v581, %v582
    %v584 = vrot.slane %v432, 3
    %v585 = vrot.slane %v433, 3
    %v586 = vsel %vm568, %v584, %v585
    %v587 = vrot.slane %v434, 3
    %v588 = vrot.slane %v435, 3
    %v589 = vsel %vm568, %v587, %v588
    %v590 = vrot.slane %v436, 3
    %v591 = vrot.slane %v437, 3
    %v592 = vsel %vm568, %v590, %v591
    %v609 = vadd.f32 %v552, %v571
    %v610 = vadd.f32 %v553, %v570
    %v611 = vadd.f32 %v554, %v574
    %v612 = vadd.f32 %v555, %v573
    %v613 = vadd.f32 %v556, %v577
    %v614 = vadd.f32 %v557, %v576
    %v615 = vadd.f32 %v558, %v580
    %v616 = vadd.f32 %v559, %v579
    %v617 = vadd.f32 %v560, %v583
    %v618 = vadd.f32 %v561, %v582
    %v619 = vadd.f32 %v562, %v586
    %v620 = vadd.f32 %v563, %v585
    %v621 = vadd.f32 %v564, %v589
    %v622 = vadd.f32 %v565, %v588
    %v623 = vadd.f32 %v566, %v592
    %v624 = vadd.f32 %v567, %v591
    %vm625 = vcmask 1043456
    %v626 = vrot.slane %v422, 4
    %v627 = vrot.slane %v423, 4
    %v628 = vsel %vm625, %v626, %v627
    %v629 = vrot.slane %v424, 4
    %v630 = vrot.slane %v425, 4
    %v631 = vsel %vm625, %v629, %v630
    %v632 = vrot.slane %v426, 4
    %v633 = vrot.slane %v427, 4
    %v634 = vsel %vm625, %v632, %v633
    %v635 = vrot.slane %v428, 4
    %v636 = vrot.slane %v429, 4
    %v637 = vsel %vm625, %v635, %v636
    %v638 = vrot.slane %v430, 4
    %v639 = vrot.slane %v431, 4
    %v640 = vsel %vm625, %v638, %v639
    %v641 = vrot.slane %v432, 4
    %v642 = vrot.slane %v433, 4
    %v643 = vsel %vm625, %v641, %v642
    %v644 = vrot.slane %v434, 4
    %v645 = vrot.slane %v435, 4
    %v646 = vsel %vm625, %v644, %v645
    %v647 = vrot.slane %v436, 4
    %v648 = vrot.slane %v437, 4
    %v649 = vsel %vm625, %v647, %v648
    %v666 = vadd.f32 %v609, %v628
    %v667 = vadd.f32 %v610, %v627
    %v668 = vadd.f32 %v611, %v631
    %v669 = vadd.f32 %v612, %v630
    %v670 = vadd.f32 %v613, %v634
    %v671 = vadd.f32 %v614, %v633
    %v672 = vadd.f32 %v615, %v637
    %v673 = vadd.f32 %v616, %v636
    %v674 = vadd.f32 %v617, %v640
    %v675 = vadd.f32 %v618, %v639
    %v676 = vadd.f32 %v619, %v643
    %v677 = vadd.f32 %v620, %v642
    %v678 = vadd.f32 %v621, %v646
    %v679 = vadd.f32 %v622, %v645
    %v680 = vadd.f32 %v623, %v649
    %v681 = vadd.f32 %v624, %v648
    %vm682 = vcmask 1042432
    %v683 = vrot.slane %v422, 5
    %v684 = vrot.slane %v423, 5
    %v685 = vsel %vm682, %v683, %v684
    %v686 = vrot.slane %v424, 5
    %v687 = vrot.slane %v425, 5
    %v688 = vsel %vm682, %v686, %v687
    %v689 = vrot.slane %v426, 5
    %v690 = vrot.slane %v427, 5
    %v691 = vsel %vm682, %v689, %v690
    %v692 = vrot.slane %v428, 5
    %v693 = vrot.slane %v429, 5
    %v694 = vsel %vm682, %v692, %v693
    %v695 = vrot.slane %v430, 5
    %v696 = vrot.slane %v431, 5
    %v697 = vsel %vm682, %v695, %v696
    %v698 = vrot.slane %v432, 5
    %v699 = vrot.slane %v433, 5
    %v700 = vsel %vm682, %v698, %v699
    %v701 = vrot.slane %v434, 5
    %v702 = vrot.slane %v435, 5
    %v703 = vsel %vm682, %v701, %v702
    %v704 = vrot.slane %v436, 5
    %v705 = vrot.slane %v437, 5
    %v706 = vsel %vm682, %v704, %v705
    %v723 = vadd.f32 %v666, %v685
    %v724 = vadd.f32 %v667, %v684
    %v725 = vadd.f32 %v668, %v688
    %v726 = vadd.f32 %v669, %v687
    %v727 = vadd.f32 %v670, %v691
    %v728 = vadd.f32 %v671, %v690
    %v729 = vadd.f32 %v672, %v694
    %v730 = vadd.f32 %v673, %v693
    %v731 = vadd.f32 %v674, %v697
    %v732 = vadd.f32 %v675, %v696
    %v733 = vadd.f32 %v676, %v700
    %v734 = vadd.f32 %v677, %v699
    %v735 = vadd.f32 %v678, %v703
    %v736 = vadd.f32 %v679, %v702
    %v737 = vadd.f32 %v680, %v706
    %v738 = vadd.f32 %v681, %v705
    %vm739 = vcmask 1041408
    %v740 = vrot.slane %v422, 6
    %v741 = vrot.slane %v423, 6
    %v742 = vsel %vm739, %v740, %v741
    %v743 = vrot.slane %v424, 6
    %v744 = vrot.slane %v425, 6
    %v745 = vsel %vm739, %v743, %v744
    %v746 = vrot.slane %v426, 6
    %v747 = vrot.slane %v427, 6
    %v748 = vsel %vm739, %v746, %v747
    %v749 = vrot.slane %v428, 6
    %v750 = vrot.slane %v429, 6
    %v751 = vsel %vm739, %v749, %v750
    %v752 = vrot.slane %v430, 6
    %v753 = vrot.slane %v431, 6
    %v754 = vsel %vm739, %v752, %v753
    %v755 = vrot.slane %v432, 6
    %v756 = vrot.slane %v433, 6
    %v757 = vsel %vm739, %v755, %v756
    %v758 = vrot.slane %v434, 6
    %v759 = vrot.slane %v435, 6
    %v760 = vsel %vm739, %v758, %v759
    %v761 = vrot.slane %v436, 6
    %v762 = vrot.slane %v437, 6
    %v763 = vsel %vm739, %v761, %v762
    %v780 = vadd.f32 %v723, %v742
    %v781 = vadd.f32 %v724, %v741
    %v782 = vadd.f32 %v725, %v745
    %v783 = vadd.f32 %v726, %v744
    %v784 = vadd.f32 %v727, %v748
    %v785 = vadd.f32 %v728, %v747
    %v786 = vadd.f32 %v729, %v751
    %v787 = vadd.f32 %v730, %v750
    %v788 = vadd.f32 %v731, %v754
    %v789 = vadd.f32 %v732, %v753
    %v790 = vadd.f32 %v733, %v757
    %v791 = vadd.f32 %v734, %v756
    %v792 = vadd.f32 %v735, %v760
    %v793 = vadd.f32 %v736, %v759
    %v794 = vadd.f32 %v737, %v763
    %v795 = vadd.f32 %v738, %v762
    %v796 = vmul.f32 %v780, 0.020408163
    %v797 = vmul.f32 %v781, 0.020408163
    %v798 = vmul.f32 %v782, 0.020408163
    %v799 = vmul.f32 %v783, 0.020408163
    %v800 = vmul.f32 %v784, 0.020408163
    %v801 = vmul.f32 %v785, 0.020408163
    %v802 = vmul.f32 %v786, 0.020408163
    %v803 = vmul.f32 %v787, 0.020408163
    %v804 = vmul.f32 %v788, 0.020408163
    %v805 = vmul.f32 %v789, 0.020408163
    %v806 = vmul.f32 %v790, 0.020408163
    %v807 = vmul.f32 %v791, 0.020408163
    %v808 = vmul.f32 %v792, 0.020408163
    %v809 = vmul.f32 %v793, 0.020408163
    %v810 = vmul.f32 %v794, 0.020408163
    %v811 = vmul.f32 %v795, 0.020408163
    %vm812 = vcmask 80896
    %813 = vst.msk [vmem:[%s1] sm:$0xff] %vm812, %v796
    %vm814 = vcmask 74752
    %815 = vst.msk [vmem:[%s1 + $0x8] sm:$0x3] %vm814, %v797
    %816 = vst.msk [vmem:[%s1 + $0x10] sm:$0xff] %vm812, %v798
    %817 = vst.msk [vmem:[%s1 + $0x18] sm:$0x3] %vm814, %v799
    %818 = vst.msk [vmem:[%s1 + $0x20] sm:$0xff] %vm812, %v800
    %819 = vst.msk [vmem:[%s1 + $0x28] sm:$0x3] %vm814, %v801
    %820 = vst.msk [vmem:[%s1 + $0x30] sm:$0xff] %vm812, %v802
    %821 = vst.msk [vmem:[%s1 + $0x38] sm:$0x3] %vm814, %v803
    %822 = vst.msk [vmem:[%s1 + $0x40] sm:$0xff] %vm812, %v804
    %823 = vst.msk [vmem:[%s1 + $0x48] sm:$0x3] %vm814, %v805
    %824 = vst.msk [vmem:[%s1 + $0x50] sm:$0xff] %vm812, %v806
    %825 = vst.msk [vmem:[%s1 + $0x58] sm:$0x3] %vm814, %v807
    %826 = vst.msk [vmem:[%s1 + $0x60] sm:$0xff] %vm812, %v808
    %827 = vst.msk [vmem:[%s1 + $0x68] sm:$0x3] %vm814, %v809
    %828 = vst.msk [vmem:[%s1 + $0x70] sm:$0xff] %vm812, %v810
    %829 = vst.msk [vmem:[%s1 + $0x78] sm:$0x3] %vm814, %v811
    // Predicated region
    $region10: #{tpu_custom_call.1} parent=1 // pred_check
      _
    $region11: #{tpu_custom_call.1} parent=1 // pred_check_branch
      %831 = sbr.rel (0) target = $region13
    $region12: #{tpu_custom_call.1} parent=1 // pred_region
      _
    $region13: #{tpu_custom_call.1} parent=1 // pred_fallthru
      _
    // Predicated region
    $region14: #{tpu_custom_call.1} parent=1 // pred_check
      _
    $region15: #{tpu_custom_call.1} parent=1 // pred_check_branch
      %833 = sbr.rel (0) target = $region17
    $region16: #{tpu_custom_call.1} parent=1 // pred_region
      _
    $region17: #{tpu_custom_call.1} parent=1 // pred_fallthru
      _
    %834 = vsyncpa [#allocation3], 1

</llo_original>
